<compile_context>
chip_gen: v7x
topology: tpu7x:2x2x1
jax: 0.10.0
libtpu: 0.0.40
codegen_flags: <defaults>
</compile_context>

<pallas_src>
import math

import jax
import jax.numpy as jnp
from jax.experimental import pallas as pl
from jax.experimental.pallas import tpu as pltpu

# ~6 MiB per block: >=91% of data-motion efficiency even at v7x's 3.2 TB/s
# (12 MiB in+out traffic per step vs ~0.35 us fixed step overhead), and the
# double-buffered live footprint (~4x block = ~24 MiB) fits every chip's VMEM.
_TARGET_BLOCK_BYTES = 6 * 1024 * 1024
_VMEM_LIMIT_BYTES = 48 * 1024 * 1024
_MAX_PACKED_WIDTH = 2048  # largest lcm(D, 128) we are willing to repack to


def _affine_kernel(z_ref, scale_ref, shift_ref, y_ref):
    # Pure VPU elementwise hot path: one vld / fused mul-add / vst per vreg.
    # scale/shift are a (1, L) row broadcast over the rows of the tile.
    y_ref[...] = z_ref[...] * scale_ref[...] + shift_ref[...]


def _pick_tile_rows(R: int, L: int, itemsize: int,
                    target_bytes: int = _TARGET_BLOCK_BYTES) -> int:
    """Row-tile size: byte-budgeted, multiple of 8, clamped to [8, R]."""
    row_bytes = L * itemsize
    if R * row_bytes <= target_bytes:
        return R                       # single full-extent block
    tb = (target_bytes // row_bytes) // 8 * 8
    tb = max(tb, 8)                    # sublane minimum
    return int(min(tb, R))


def _tiled_affine(z2d: jax.Array, scale_row: jax.Array,
                  shift_row: jax.Array) -> jax.Array:
    """Run the elementwise affine kernel over a (R, L) array, tiled on rows.

    The block always spans the full row width L (contiguous HBM range -> one
    linear DMA per block); only the row axis is tiled.
    """
    R, L = z2d.shape
    tb = _pick_tile_rows(R, L, z2d.dtype.itemsize)
    grid = (pl.cdiv(R, tb),)
    return pl.pallas_call(
        _affine_kernel,
        out_shape=jax.ShapeDtypeStruct((R, L), z2d.dtype),
        grid=grid,
        in_specs=[
            # z: row-tiled, full width.  (Default double buffering is enough;
            # sweep pipeline_mode=pl.Buffered(3) only if a trace shows exposed
            # DMA on very short grids.)
            pl.BlockSpec((tb, L), lambda i: (i, 0)),
            pl.BlockSpec((1, L), lambda i: (0, 0)),   # params: same block every step
            pl.BlockSpec((1, L), lambda i: (0, 0)),
        ],
        out_specs=pl.BlockSpec((tb, L), lambda i: (i, 0)),
        compiler_params=pltpu.CompilerParams(
            dimension_semantics=("parallel",),        # shard rows across TCs on v7x
            vmem_limit_bytes=_VMEM_LIMIT_BYTES),
    )(z2d, scale_row, shift_row)


def flow_forward(z: jax.Array, log_scale: jax.Array, shift: jax.Array):
    """Forward pass of the (Affine) Flow.

    Parameters
    ----------
    z         : (B, D) float32
    log_scale : (D,)   float32
    shift     : (D,)   float32

    Returns
    -------
    z_      : (B, D) float32  transformed tensor
    log_det : (B,)   float32  log|det Jacobian| per batch element
    """
    B, D = z.shape

    # Hoisted out of the kernel (single (D,) vector / scalar work):
    scale = jnp.exp(log_scale).astype(z.dtype)
    shift = shift.astype(z.dtype)
    log_det = jnp.full((B,), jnp.sum(log_scale), dtype=jnp.float32)

    # Lane-dense repack: pack rows to a width that is a multiple of 128 so all
    # stores are unmasked full-width vst.  D % 128 == 0 is already lane-dense.
    packed_width = None
    if D % 128 != 0:
        C = (D * 128) // math.gcd(D, 128)          # lcm(D, 128)
        if C <= _MAX_PACKED_WIDTH and (B * D) % C == 0 and B * D >= C:
            packed_width = C

    if packed_width is not None:
        C = packed_width
        rep = C // D
        # Row-major reshape is free; lane j of a packed row holds feature
        # j % D, so the per-feature parameters are tiled across the lanes.
        z2d = z.reshape((B * D) // C, C)
        scale_row = jnp.tile(scale, rep).reshape(1, C)
        shift_row = jnp.tile(shift, rep).reshape(1, C)
        y = _tiled_affine(z2d, scale_row, shift_row).reshape(B, D)
    else:
        # General path: tile over batch rows with the full feature width
        # (block last dim equals the full array dim, so any D is legal).
        y = _tiled_affine(z, scale.reshape(1, D), shift.reshape(1, D))

    return y, log_det


# TODO(synk): `Flow.inverse` is also abstract in the reference module; only the
# forward contract (z_, log_det) is implemented here.


def _check(B, D, key):
    kz, ks, kb = jax.random.split(key, 3)
    z = jax.random.normal(kz, (B, D), dtype=jnp.float32)
    log_scale = 0.1 * jax.random.normal(ks, (D,), dtype=jnp.float32)
    shift = 0.1 * jax.random.normal(kb, (D,), dtype=jnp.float32)

    y, log_det = flow_forward(z, log_scale, shift)
    jax.block_until_ready((y, log_det))

    y_ref = jnp.exp(log_scale) * z + shift
    log_det_ref = jnp.ones((B,), jnp.float32) * jnp.sum(log_scale)
    assert y.shape == (B, D) and log_det.shape == (B,)
    assert jnp.allclose(y, y_ref, atol=1e-5, rtol=1e-5)
    assert jnp.allclose(log_det, log_det_ref, atol=1e-5, rtol=1e-5)


if __name__ == "__main__":
    key = jax.random.PRNGKey(0)
    k1, k2, k3 = jax.random.split(key, 3)

    # Small demo shapes covering all layout paths:
    _check(128, 32, k1)   # lane-dense repack, C = lcm(32,128)  = 128
    _check(8, 96, k2)     # lane-dense repack, C = lcm(96,128)  = 384
    _check(16, 100, k3)   # general path (lcm(100,128) = 3200 > cap)

    print("KERNEL_OK")
</pallas_src>

<mosaic_0001>
module attributes {stable_mosaic.version = 11 : i64} {
  func.func @_affine_kernel(%arg0: i32, %arg1: memref<32x128xf32, #tpu.memory_space<vmem>>, %arg2: memref<1x128xf32, #tpu.memory_space<vmem>>, %arg3: memref<1x128xf32, #tpu.memory_space<vmem>>, %arg4: memref<32x128xf32, #tpu.memory_space<vmem>>) attributes {dimension_semantics = [#tpu.dimension_semantics<parallel>], iteration_bounds = array<i64: 1>, scalar_prefetch = 0 : i64, scratch_operands = 0 : i64, tpu.core_type = #tpu.core_type<tc>, window_params = [{transform_indices = @transform_0, window_bounds = array<i64: 32, 128>}, {pipeline_mode = #tpu.pipeline_mode<synchronous>, transform_indices = @transform_1, window_bounds = array<i64: 1, 128>}, {pipeline_mode = #tpu.pipeline_mode<synchronous>, transform_indices = @transform_2, window_bounds = array<i64: 1, 128>}, {transform_indices = @transform_3, window_bounds = array<i64: 32, 128>}]} {
    %c0 = arith.constant 0 : index
    %c0_0 = arith.constant 0 : index
    %0 = vector.load %arg1[%c0, %c0_0] : memref<32x128xf32, #tpu.memory_space<vmem>>, vector<32x128xf32>
    %c0_1 = arith.constant 0 : index
    %c0_2 = arith.constant 0 : index
    %1 = vector.load %arg2[%c0_1, %c0_2] : memref<1x128xf32, #tpu.memory_space<vmem>>, vector<1x128xf32>
    %2 = vector.broadcast %1 : vector<1x128xf32> to vector<32x128xf32>
    %3 = arith.mulf %0, %2 : vector<32x128xf32>
    %c0_3 = arith.constant 0 : index
    %c0_4 = arith.constant 0 : index
    %4 = vector.load %arg3[%c0_3, %c0_4] : memref<1x128xf32, #tpu.memory_space<vmem>>, vector<1x128xf32>
    %5 = vector.broadcast %4 : vector<1x128xf32> to vector<32x128xf32>
    %6 = arith.addf %3, %5 : vector<32x128xf32>
    %c0_5 = arith.constant 0 : index
    %c0_6 = arith.constant 0 : index
    %7 = vector.load %arg4[%c0_5, %c0_6] : memref<32x128xf32, #tpu.memory_space<vmem>>, vector<32x128xf32>
    tpu.vector_store %arg4[%c0_5, %c0_6], %6 {strides = array<i32>} : memref<32x128xf32, #tpu.memory_space<vmem>>, vector<32x128xf32>,
    return
  }
  func.func @transform_0(%arg0: i32) -> (i32, i32) {
    %c0_i32 = arith.constant 0 : i32
    %c0_i32_0 = arith.constant 0 : i32
    return %arg0, %c0_i32 : i32, i32
  }
  func.func @transform_1(%arg0: i32) -> (i32, i32) {
    %c0_i32 = arith.constant 0 : i32
    %c0_i32_0 = arith.constant 0 : i32
    %c0_i32_1 = arith.constant 0 : i32
    return %c0_i32, %c0_i32_0 : i32, i32
  }
  func.func @transform_2(%arg0: i32) -> (i32, i32) {
    %c0_i32 = arith.constant 0 : i32
    %c0_i32_0 = arith.constant 0 : i32
    %c0_i32_1 = arith.constant 0 : i32
    return %c0_i32, %c0_i32_0 : i32, i32
  }
  func.func @transform_3(%arg0: i32) -> (i32, i32) {
    %c0_i32 = arith.constant 0 : i32
    %c0_i32_0 = arith.constant 0 : i32
    return %arg0, %c0_i32 : i32, i32
  }
}

</mosaic_0001>

<llo_original>
// kernel: tpu_custom_call.1
$region0: #{tpu_custom_call.1}
  #allocation0 [shape = 'u32[]', space=smem, size = 0x4, offset = 0x4, fixed_abs, tag = 'smem constant byte address 0x4 - core index']
  #allocation1 [shape = 'u32[144,128]{1,0:T(1,128)}', space=vmem, size = 0x12000, scoped, tag = 'internal scratch']
  %s0 = inlined_call_operand.hbm [shape: f32[32,128], index: 0, kind: input, shape index: {}]
  %s1 = inlined_call_operand.vmem [shape: f32[1,128], index: 1, kind: input, shape index: {}]
  %s2 = inlined_call_operand.vmem [shape: f32[1,128], index: 2, kind: input, shape index: {}]
  %s3 = inlined_call_operand.hbm [shape: f32[32,128], index: 3, kind: output, shape index: {}]
  %s4 = sld [smem:[#allocation0]]
  $region26: #{tpu_custom_call.1} parent=0
    _
  %s6 = ssub.s32 1, %s4
  %s7 = scalar_select 0, %s6, %s4
  $region1: #{tpu_custom_call.1} parent=0
    #allocation2 [shape = 'u8[16384]{0}', space=vmem, size = 0x4000, scoped, tag = 'input window, operand 0, single buffered']
    #allocation3 [shape = 's32[1]{0}', space=sflag, size = 0x4, scoped, tag = 'scoped memory for tpu_custom_call.1']
    #allocation4 [shape = 's32[1]{0}', space=sflag, size = 0x4, scoped, tag = 'scoped memory for tpu_custom_call.1']
    #allocation5 [shape = 'u8[16384]{0}', space=vmem, size = 0x4000, scoped, tag = 'output window, operand 0, single buffered']
    %8 = vsyncpa [#allocation3], 0
    %9 = vsyncpa [#allocation4], 0
    // Predicated region
    $region2: #{tpu_custom_call.1} parent=1 // pred_check
      _
    $region3: #{tpu_custom_call.1} parent=1 // pred_check_branch
      %11 = sbr.rel (0) target = $region5
    $region4: #{tpu_custom_call.1} parent=1 // pred_region
      %s13 = ssub.s32 512, 512
      %14 = vsyncadd [#allocation3], %s13
      %s15 = sshll.u32 [#allocation2], 4
      %s16 = int_to_ptr.vmem [resolvable:$true] %s15
      %21 = dma.hbm_to_vmem [thread:$0]  %s0, 512, %s16, [#allocation3], 128, 128, 8
    $region5: #{tpu_custom_call.1} parent=1 // pred_fallthru
      _
    // Predicated region
    $region6: #{tpu_custom_call.1} parent=1 // pred_check
      _
    $region7: #{tpu_custom_call.1} parent=1 // pred_check_branch
      %23 = sbr.rel (0) target = $region9
    $region8: #{tpu_custom_call.1} parent=1 // pred_region
      _
    $region9: #{tpu_custom_call.1} parent=1 // pred_fallthru
      _
    // Predicated region
    $region10: #{tpu_custom_call.1} parent=1 // pred_check
      _
    $region11: #{tpu_custom_call.1} parent=1 // pred_check_branch
      %25 = sbr.rel (0) target = $region13
    $region12: #{tpu_custom_call.1} parent=1 // pred_region
      _
    $region13: #{tpu_custom_call.1} parent=1 // pred_fallthru
      _
    // Predicated region
    $region14: #{tpu_custom_call.1} parent=1 // pred_check
      _
    $region15: #{tpu_custom_call.1} parent=1 // pred_check_branch
      %27 = sbr.rel (0) target = $region17
    $region16: #{tpu_custom_call.1} parent=1 // pred_region
      %28 = dma.done [#allocation3], 512
    $region17: #{tpu_custom_call.1} parent=1 // pred_fallthru
      _
    %v29 = vld [vmem:[#allocation2] sm:$0xff]
    %v30 = vld [vmem:[#allocation2 + $0x8] sm:$0xff]
    %v31 = vld [vmem:[#allocation2 + $0x10] sm:$0xff]
    %v32 = vld [vmem:[#allocation2 + $0x18] sm:$0xff]
    %v33 = vld [vmem:[%s1] sm:$0x1]
    %v35 = vlaneseq
    %v36 = vshrl.u32 %v35, 7
    %v37 = vsub.s32 0, %v36
    %v38 = vrot.slane %v33, %v37
    %v40 = vmul.f32 %v29, %v38
    %v41 = vmul.f32 %v30, %v38
    %v42 = vmul.f32 %v31, %v38
    %v43 = vmul.f32 %v32, %v38
    %v44 = vld [vmem:[%s2] sm:$0x1]
    %v46 = vlaneseq
    %v47 = vshrl.u32 %v46, 7
    %v48 = vsub.s32 0, %v47
    %v49 = vrot.slane %v44, %v48
    %v51 = vadd.f32 %v40, %v49
    %v52 = vadd.f32 %v41, %v49
    %v53 = vadd.f32 %v42, %v49
    %v54 = vadd.f32 %v43, %v49
    %55 = vst [vmem:[#allocation5] sm:$0xff] %v51
    %56 = vst [vmem:[#allocation5 + $0x8] sm:$0xff] %v52
    %57 = vst [vmem:[#allocation5 + $0x10] sm:$0xff] %v53
    %58 = vst [vmem:[#allocation5 + $0x18] sm:$0xff] %v54
    // Predicated region
    $region18: #{tpu_custom_call.1} parent=1 // pred_check
      _
    $region19: #{tpu_custom_call.1} parent=1 // pred_check_branch
      %60 = sbr.rel (0) target = $region21
    $region20: #{tpu_custom_call.1} parent=1 // pred_region
      %s62 = ssub.s32 512, 512
      %63 = vsyncadd [#allocation4], %s62
      %s64 = sshll.u32 [#allocation5], 4
      %s65 = int_to_ptr.vmem [resolvable:$true] %s64
      %70 = dma.vmem_to_hbm [thread:$0]  %s65, 512, %s3, [#allocation4], 128, 128, 8
    $region21: #{tpu_custom_call.1} parent=1 // pred_fallthru
      _
    // Predicated region
    $region22: #{tpu_custom_call.1} parent=1 // pred_check
      _
    $region23: #{tpu_custom_call.1} parent=1 // pred_check_branch
      %72 = sbr.rel (0) target = $region25
    $region24: #{tpu_custom_call.1} parent=1 // pred_region
      %73 = dma.done [#allocation4], 512
    $region25: #{tpu_custom_call.1} parent=1 // pred_fallthru
      _
    %74 = vsyncpa [#allocation3], 1
    %75 = vsyncpa [#allocation4], 1

</llo_original>
